<compile_context>
chip_gen: v7x
topology: tpu7x:2x2x1
jax: 0.10.0
libtpu: 0.0.40
codegen_flags: <defaults>
</compile_context>

<pallas_src>
import jax
import jax.numpy as jnp
from jax.experimental import pallas as pl
from jax.experimental.pallas import tpu as pltpu

# ----------------------------- model config -----------------------------
BATCH = 2
C, H, W = 4, 16, 16
IN_SIZE = C * H * W            # 1024
HIDDEN_SIZE = 128
OUT_SIZE = 16
OUT_PAD = 128                  # lane-dense padded class dim
N_HIDDEN = 2                   # default of the torch module
NEG_LARGE = -1e30              # padded-logit bias -> drops out of softmax


def _round_up(x, m):
    return (x + m - 1) // m * m


# ------------------------------ kernel ----------------------------------
def deep_mle_kernel(x_ref, w1_ref, b1_ref, wh_ref, bh_ref, w4_ref, b4_ref,
                    o_ref):
    """Fused MLP forward + log_softmax for one batch tile.

    x_ref  : (TB, IN)   bf16 flattened input tile
    w1_ref : (IN, HID)  bf16 layer1 weight (transposed vs torch)
    b1_ref : (1, HID)   f32  layer1 bias
    wh_ref : (N_HIDDEN, HID, HID) bf16 stacked hidden weights
    bh_ref : (N_HIDDEN, 1, HID)   f32  stacked hidden biases
    w4_ref : (HID, OUT_PAD) bf16 layer4 weight, zero-padded columns
    b4_ref : (1, OUT_PAD)   f32  layer4 bias, padded columns = -1e30
    o_ref  : (TB, OUT_PAD)  f32  log-softmax output (padded cols garbage)
    """
    # layer1 (bf16 MXU, f32 accumulate) + bias + ReLU
    h = b1_ref[...] + jnp.dot(x_ref[...], w1_ref[...],
                              preferred_element_type=jnp.float32)
    h = jnp.maximum(h, 0.0)

    # hidden stack: static unroll (N_HIDDEN is a compile-time constant)
    for i in range(N_HIDDEN):
        h = bh_ref[i] + jnp.dot(h.astype(jnp.bfloat16), wh_ref[i],
                                preferred_element_type=jnp.float32)
        h = jnp.maximum(h, 0.0)

    # layer4 -> lane-dense padded logits; padded bias (-1e30) makes the
    # extra columns vanish from the softmax (exp underflows to 0).
    logits = b4_ref[...] + jnp.dot(h.astype(jnp.bfloat16), w4_ref[...],
                                   preferred_element_type=jnp.float32)

    # log_softmax along the class axis
    m = jnp.max(logits, axis=-1, keepdims=True)
    shifted = logits - m
    lse = jnp.log(jnp.sum(jnp.exp(shifted), axis=-1, keepdims=True))
    o_ref[...] = shifted - lse


# ------------------------------ wrapper ----------------------------------
@jax.jit
def deep_mle_classify(x_nchw, kernel_params):
    """x_nchw: [B, C, H, W] float32 -> log-probs [B, OUT_SIZE] float32."""
    w1, b1, wh, bh, w4p, b4p = kernel_params
    B = x_nchw.shape[0]
    x_flat = x_nchw.reshape(B, -1).astype(jnp.bfloat16)  # == torch x.view(B,-1)

    # Batch tiling: up to 128 rows per tile; pad B to a multiple of 16 so the
    # bf16 input tile is sublane-aligned. Weights stay VMEM-resident across
    # all batch tiles (their index_maps always return block 0).
    tile_b = min(128, _round_up(B, 16))
    b_pad = _round_up(B, tile_b)
    if b_pad != B:
        x_flat = jnp.pad(x_flat, ((0, b_pad - B), (0, 0)))
    grid = (b_pad // tile_b,)

    resident = lambda shp: pl.BlockSpec(shp, lambda i, _n=len(shp): (0,) * _n)

    out = pl.pallas_call(
        deep_mle_kernel,
        out_shape=jax.ShapeDtypeStruct((b_pad, OUT_PAD), jnp.float32),
        grid=grid,
        in_specs=[
            pl.BlockSpec((tile_b, IN_SIZE), lambda i: (i, 0)),   # x tile
            resident(w1.shape),
            resident(b1.shape),
            resident(wh.shape),
            resident(bh.shape),
            resident(w4p.shape),
            resident(b4p.shape),
        ],
        out_specs=pl.BlockSpec((tile_b, OUT_PAD), lambda i: (i, 0)),
        compiler_params=pltpu.CompilerParams(
            dimension_semantics=("parallel",)),   # megacore split on v7x
    )(x_flat, w1, b1, wh, bh, w4p, b4p)

    return out[:B, :OUT_SIZE]


# --------------------------- param init ----------------------------------
def init_params(key):
    """Master f32 parameters (weights already transposed vs nn.Linear)."""
    ks = jax.random.split(key, 2 + 2 * N_HIDDEN + 2)
    scale = 0.05
    w1 = scale * jax.random.normal(ks[0], (IN_SIZE, HIDDEN_SIZE), jnp.float32)
    b1 = scale * jax.random.normal(ks[1], (1, HIDDEN_SIZE), jnp.float32)
    wh = jnp.stack([
        scale * jax.random.normal(ks[2 + i], (HIDDEN_SIZE, HIDDEN_SIZE),
                                  jnp.float32) for i in range(N_HIDDEN)
    ])
    bh = jnp.stack([
        scale * jax.random.normal(ks[2 + N_HIDDEN + i], (1, HIDDEN_SIZE),
                                  jnp.float32) for i in range(N_HIDDEN)
    ])
    w4 = scale * jax.random.normal(ks[-2], (HIDDEN_SIZE, OUT_SIZE), jnp.float32)
    b4 = scale * jax.random.normal(ks[-1], (1, OUT_SIZE), jnp.float32)
    return w1, b1, wh, bh, w4, b4


def prepare_kernel_params(params):
    """bf16 weights in HBM (halves DMA + MXU passes), f32 biases,
    layer4 padded to a lane-dense 128-wide class dim."""
    w1, b1, wh, bh, w4, b4 = params
    w4p = jnp.zeros((HIDDEN_SIZE, OUT_PAD), jnp.bfloat16)
    w4p = w4p.at[:, :OUT_SIZE].set(w4.astype(jnp.bfloat16))
    b4p = jnp.full((1, OUT_PAD), NEG_LARGE, jnp.float32)
    b4p = b4p.at[:, :OUT_SIZE].set(b4)
    return (w1.astype(jnp.bfloat16), b1,
            wh.astype(jnp.bfloat16), bh,
            w4p, b4p)


# ------------------------- pure-JAX reference -----------------------------
def reference(x_nchw, params):
    w1, b1, wh, bh, w4, b4 = params
    x = x_nchw.reshape(x_nchw.shape[0], -1)
    h = jnp.maximum(x @ w1 + b1, 0.0)
    for i in range(N_HIDDEN):
        h = jnp.maximum(h @ wh[i] + bh[i], 0.0)
    logits = h @ w4 + b4
    return jax.nn.log_softmax(logits, axis=1)


# ------------------------------- main -------------------------------------
if __name__ == "__main__":
    key = jax.random.PRNGKey(0)
    kx, kp = jax.random.split(key)
    x = jax.random.normal(kx, (BATCH, C, H, W), jnp.float32)

    params = init_params(kp)                    # f32 masters (for reference)
    kparams = prepare_kernel_params(params)     # bf16 / padded kernel params

    out = deep_mle_classify(x, kparams)
    out = jax.block_until_ready(out)

    ref = reference(x, params)                  # full-f32 reference
    assert out.shape == (BATCH, OUT_SIZE)
    err = jnp.max(jnp.abs(out - ref))
    # bf16 weights -> loosened tolerance (accumulation stays f32)
    assert err < 3e-2, f"max abs err = {err}"

    print("KERNEL_OK")
</pallas_src>

<mosaic_0001>
module attributes {stable_mosaic.version = 11 : i64} {
  func.func @deep_mle_kernel(%arg0: i32, %arg1: memref<16x1024xbf16, #tpu.memory_space<vmem>>, %arg2: memref<1024x128xbf16, #tpu.memory_space<vmem>>, %arg3: memref<1x128xf32, #tpu.memory_space<vmem>>, %arg4: memref<2x128x128xbf16, #tpu.memory_space<vmem>>, %arg5: memref<2x1x128xf32, #tpu.memory_space<vmem>>, %arg6: memref<128x128xbf16, #tpu.memory_space<vmem>>, %arg7: memref<1x128xf32, #tpu.memory_space<vmem>>, %arg8: memref<16x128xf32, #tpu.memory_space<vmem>>) attributes {dimension_semantics = [#tpu.dimension_semantics<parallel>], iteration_bounds = array<i64: 1>, scalar_prefetch = 0 : i64, scratch_operands = 0 : i64, tpu.core_type = #tpu.core_type<tc>, window_params = [{transform_indices = @transform_0, window_bounds = array<i64: 16, 1024>}, {pipeline_mode = #tpu.pipeline_mode<synchronous>, transform_indices = @transform_1, window_bounds = array<i64: 1024, 128>}, {pipeline_mode = #tpu.pipeline_mode<synchronous>, transform_indices = @transform_2, window_bounds = array<i64: 1, 128>}, {pipeline_mode = #tpu.pipeline_mode<synchronous>, transform_indices = @transform_3, window_bounds = array<i64: 2, 128, 128>}, {pipeline_mode = #tpu.pipeline_mode<synchronous>, transform_indices = @transform_4, window_bounds = array<i64: 2, 1, 128>}, {pipeline_mode = #tpu.pipeline_mode<synchronous>, transform_indices = @transform_5, window_bounds = array<i64: 128, 128>}, {pipeline_mode = #tpu.pipeline_mode<synchronous>, transform_indices = @transform_6, window_bounds = array<i64: 1, 128>}, {transform_indices = @transform_7, window_bounds = array<i64: 16, 128>}]} {
    %c0 = arith.constant 0 : index
    %c0_0 = arith.constant 0 : index
    %0 = vector.load %arg3[%c0, %c0_0] : memref<1x128xf32, #tpu.memory_space<vmem>>, vector<1x128xf32>
    %c0_1 = arith.constant 0 : index
    %c0_2 = arith.constant 0 : index
    %1 = vector.load %arg1[%c0_1, %c0_2] : memref<16x1024xbf16, #tpu.memory_space<vmem>>, vector<16x1024xbf16>
    %c0_3 = arith.constant 0 : index
    %c0_4 = arith.constant 0 : index
    %2 = vector.load %arg2[%c0_3, %c0_4] : memref<1024x128xbf16, #tpu.memory_space<vmem>>, vector<1024x128xbf16>
    %cst = arith.constant dense<0.000000e+00> : vector<16x128xf32>
    %3 = tpu.matmul %1, %2, %cst {dimension_numbers = #tpu.dot_dimension_numbers<[1], [0], [0], [1], [0, 0, 1, 1], [], []>} : vector<16x1024xbf16>, vector<1024x128xbf16>, vector<16x128xf32> -> vector<16x128xf32>
    %4 = vector.broadcast %0 : vector<1x128xf32> to vector<16x128xf32>
    %5 = arith.addf %4, %3 : vector<16x128xf32>
    %cst_5 = arith.constant 0.000000e+00 : f32
    %6 = vector.broadcast %cst_5 : f32 to vector<16x128xf32>
    %7 = arith.maximumf %5, %6 : vector<16x128xf32>
    %c0_6 = arith.constant 0 : index
    %c0_7 = arith.constant 0 : index
    %c0_8 = arith.constant 0 : index
    %8 = vector.load %arg5[%c0_6, %c0_7, %c0_8] : memref<2x1x128xf32, #tpu.memory_space<vmem>>, vector<1x1x128xf32>
    %9 = vector.shape_cast %8 : vector<1x1x128xf32> to vector<1x128xf32>
    %10 = arith.truncf %7 : vector<16x128xf32> to vector<16x128xbf16>
    %c0_9 = arith.constant 0 : index
    %c0_10 = arith.constant 0 : index
    %c0_11 = arith.constant 0 : index
    %11 = vector.load %arg4[%c0_9, %c0_10, %c0_11] : memref<2x128x128xbf16, #tpu.memory_space<vmem>>, vector<1x128x128xbf16>
    %12 = vector.shape_cast %11 : vector<1x128x128xbf16> to vector<128x128xbf16>
    %cst_12 = arith.constant dense<0.000000e+00> : vector<16x128xf32>
    %13 = tpu.matmul %10, %12, %cst_12 {dimension_numbers = #tpu.dot_dimension_numbers<[1], [0], [0], [1], [0, 0, 1, 1], [], []>} : vector<16x128xbf16>, vector<128x128xbf16>, vector<16x128xf32> -> vector<16x128xf32>
    %14 = vector.broadcast %9 : vector<1x128xf32> to vector<16x128xf32>
    %15 = arith.addf %14, %13 : vector<16x128xf32>
    %cst_13 = arith.constant 0.000000e+00 : f32
    %16 = vector.broadcast %cst_13 : f32 to vector<16x128xf32>
    %17 = arith.maximumf %15, %16 : vector<16x128xf32>
    %c1 = arith.constant 1 : index
    %c0_14 = arith.constant 0 : index
    %c0_15 = arith.constant 0 : index
    %18 = vector.load %arg5[%c1, %c0_14, %c0_15] : memref<2x1x128xf32, #tpu.memory_space<vmem>>, vector<1x1x128xf32>
    %19 = vector.shape_cast %18 : vector<1x1x128xf32> to vector<1x128xf32>
    %20 = arith.truncf %17 : vector<16x128xf32> to vector<16x128xbf16>
    %c1_16 = arith.constant 1 : index
    %c0_17 = arith.constant 0 : index
    %c0_18 = arith.constant 0 : index
    %21 = vector.load %arg4[%c1_16, %c0_17, %c0_18] : memref<2x128x128xbf16, #tpu.memory_space<vmem>>, vector<1x128x128xbf16>
    %22 = vector.shape_cast %21 : vector<1x128x128xbf16> to vector<128x128xbf16>
    %cst_19 = arith.constant dense<0.000000e+00> : vector<16x128xf32>
    %23 = tpu.matmul %20, %22, %cst_19 {dimension_numbers = #tpu.dot_dimension_numbers<[1], [0], [0], [1], [0, 0, 1, 1], [], []>} : vector<16x128xbf16>, vector<128x128xbf16>, vector<16x128xf32> -> vector<16x128xf32>
    %24 = vector.broadcast %19 : vector<1x128xf32> to vector<16x128xf32>
    %25 = arith.addf %24, %23 : vector<16x128xf32>
    %cst_20 = arith.constant 0.000000e+00 : f32
    %26 = vector.broadcast %cst_20 : f32 to vector<16x128xf32>
    %27 = arith.maximumf %25, %26 : vector<16x128xf32>
    %c0_21 = arith.constant 0 : index
    %c0_22 = arith.constant 0 : index
    %28 = vector.load %arg7[%c0_21, %c0_22] : memref<1x128xf32, #tpu.memory_space<vmem>>, vector<1x128xf32>
    %29 = arith.truncf %27 : vector<16x128xf32> to vector<16x128xbf16>
    %c0_23 = arith.constant 0 : index
    %c0_24 = arith.constant 0 : index
    %30 = vector.load %arg6[%c0_23, %c0_24] : memref<128x128xbf16, #tpu.memory_space<vmem>>, vector<128x128xbf16>
    %cst_25 = arith.constant dense<0.000000e+00> : vector<16x128xf32>
    %31 = tpu.matmul %29, %30, %cst_25 {dimension_numbers = #tpu.dot_dimension_numbers<[1], [0], [0], [1], [0, 0, 1, 1], [], []>} : vector<16x128xbf16>, vector<128x128xbf16>, vector<16x128xf32> -> vector<16x128xf32>
    %32 = vector.broadcast %28 : vector<1x128xf32> to vector<16x128xf32>
    %33 = arith.addf %32, %31 : vector<16x128xf32>
    %cst_26 = arith.constant dense<0xFF800000> : vector<16xf32>
    %34 = vector.multi_reduction <maximumf>, %33, %cst_26 [1] : vector<16x128xf32> to vector<16xf32>
    %35 = vector.shape_cast %34 : vector<16xf32> to vector<16x1xf32>
    %36 = vector.broadcast %35 : vector<16x1xf32> to vector<16x128xf32>
    %37 = arith.subf %33, %36 : vector<16x128xf32>
    %38 = math.exp %37 : vector<16x128xf32>
    %cst_27 = arith.constant dense<0.000000e+00> : vector<16xf32>
    %39 = vector.multi_reduction <add>, %38, %cst_27 [1] : vector<16x128xf32> to vector<16xf32>
    %40 = vector.shape_cast %39 : vector<16xf32> to vector<16x1xf32>
    %41 = math.log %40 : vector<16x1xf32>
    %42 = vector.broadcast %41 : vector<16x1xf32> to vector<16x128xf32>
    %43 = arith.subf %37, %42 : vector<16x128xf32>
    %c0_28 = arith.constant 0 : index
    %c0_29 = arith.constant 0 : index
    %44 = vector.load %arg8[%c0_28, %c0_29] : memref<16x128xf32, #tpu.memory_space<vmem>>, vector<16x128xf32>
    tpu.vector_store %arg8[%c0_28, %c0_29], %43 {strides = array<i32>} : memref<16x128xf32, #tpu.memory_space<vmem>>, vector<16x128xf32>,
    return
  }
  func.func @transform_0(%arg0: i32) -> (i32, i32) {
    %c0_i32 = arith.constant 0 : i32
    %c0_i32_0 = arith.constant 0 : i32
    return %arg0, %c0_i32 : i32, i32
  }
  func.func @transform_1(%arg0: i32) -> (i32, i32) {
    %c0_i32 = arith.constant 0 : i32
    %c0_i32_0 = arith.constant 0 : i32
    %c0_i32_1 = arith.constant 0 : i32
    return %c0_i32, %c0_i32_0 : i32, i32
  }
  func.func @transform_2(%arg0: i32) -> (i32, i32) {
    %c0_i32 = arith.constant 0 : i32
    %c0_i32_0 = arith.constant 0 : i32
    %c0_i32_1 = arith.constant 0 : i32
    return %c0_i32, %c0_i32_0 : i32, i32
  }
  func.func @transform_3(%arg0: i32) -> (i32, i32, i32) {
    %c0_i32 = arith.constant 0 : i32
    %c0_i32_0 = arith.constant 0 : i32
    %c0_i32_1 = arith.constant 0 : i32
    %c0_i32_2 = arith.constant 0 : i32
    return %c0_i32, %c0_i32_0, %c0_i32_1 : i32, i32, i32
  }
  func.func @transform_4(%arg0: i32) -> (i32, i32, i32) {
    %c0_i32 = arith.constant 0 : i32
    %c0_i32_0 = arith.constant 0 : i32
    %c0_i32_1 = arith.constant 0 : i32
    %c0_i32_2 = arith.constant 0 : i32
    return %c0_i32, %c0_i32_0, %c0_i32_1 : i32, i32, i32
  }
  func.func @transform_5(%arg0: i32) -> (i32, i32) {
    %c0_i32 = arith.constant 0 : i32
    %c0_i32_0 = arith.constant 0 : i32
    %c0_i32_1 = arith.constant 0 : i32
    return %c0_i32, %c0_i32_0 : i32, i32
  }
  func.func @transform_6(%arg0: i32) -> (i32, i32) {
    %c0_i32 = arith.constant 0 : i32
    %c0_i32_0 = arith.constant 0 : i32
    %c0_i32_1 = arith.constant 0 : i32
    return %c0_i32, %c0_i32_0 : i32, i32
  }
  func.func @transform_7(%arg0: i32) -> (i32, i32) {
    %c0_i32 = arith.constant 0 : i32
    %c0_i32_0 = arith.constant 0 : i32
    return %arg0, %c0_i32 : i32, i32
  }
}

</mosaic_0001>

<llo_original>
// kernel: deep_mle_classify.1
$region0: #{deep_mle_classify.1}
  #allocation0 [shape = 'u32[]', space=smem, size = 0x4, offset = 0x4, fixed_abs, tag = 'smem constant byte address 0x4 - core index']
  #allocation1 [shape = 'u32[144,128]{1,0:T(1,128)}', space=vmem, size = 0x12000, scoped, tag = 'internal scratch']
  %s0 = inlined_call_operand.vmem [shape: bf16[16,1024], index: 0, kind: input, shape index: {}]
  %s1 = inlined_call_operand.hbm [shape: bf16[1024,128], index: 1, kind: input, shape index: {}]
  %s2 = inlined_call_operand.vmem [shape: f32[1,128], index: 2, kind: input, shape index: {}]
  %s3 = inlined_call_operand.vmem [shape: bf16[2,128,128], index: 3, kind: input, shape index: {}]
  %s4 = inlined_call_operand.vmem [shape: f32[2,1,128], index: 4, kind: input, shape index: {}]
  %s5 = inlined_call_operand.vmem [shape: bf16[128,128], index: 5, kind: input, shape index: {}]
  %s6 = inlined_call_operand.vmem [shape: f32[1,128], index: 6, kind: input, shape index: {}]
  %s7 = inlined_call_operand.vmem [shape: f32[16,128], index: 7, kind: output, shape index: {}]
  %s8 = sld [smem:[#allocation0]]
  $region42: #{deep_mle_classify.1} parent=0
    _
  %s10 = ssub.s32 1, %s8
  %s11 = scalar_select 0, %s10, %s8
  $region1: #{deep_mle_classify.1} parent=0
    #allocation2 [shape = 'u8[262144]{0}', space=vmem, size = 0x40000, scoped, tag = 'input window, operand 1, single buffered']
    #allocation3 [shape = 's32[1]{0}', space=sflag, size = 0x4, scoped, tag = 'scoped memory for deep_mle_classify.1']
    %12 = vsyncpa [#allocation3], 0
    // Predicated region
    $region2: #{deep_mle_classify.1} parent=1 // pred_check
      _
    $region3: #{deep_mle_classify.1} parent=1 // pred_check_branch
      %14 = sbr.rel (0) target = $region5
    $region4: #{deep_mle_classify.1} parent=1 // pred_region
      _
    $region5: #{deep_mle_classify.1} parent=1 // pred_fallthru
      _
    // Predicated region
    $region6: #{deep_mle_classify.1} parent=1 // pred_check
      _
    $region7: #{deep_mle_classify.1} parent=1 // pred_check_branch
      %16 = sbr.rel (0) target = $region9
    $region8: #{deep_mle_classify.1} parent=1 // pred_region
      %s18 = ssub.s32 8192, 8192
      %19 = vsyncadd [#allocation3], %s18
      %s20 = sshll.u32 [#allocation2], 4
      %s21 = int_to_ptr.vmem [resolvable:$true] %s20
      %26 = dma.hbm_to_vmem [thread:$0]  %s1, 8192, %s21, [#allocation3], 64, 64, 4
    $region9: #{deep_mle_classify.1} parent=1 // pred_fallthru
      _
    // Predicated region
    $region10: #{deep_mle_classify.1} parent=1 // pred_check
      _
    $region11: #{deep_mle_classify.1} parent=1 // pred_check_branch
      %28 = sbr.rel (0) target = $region13
    $region12: #{deep_mle_classify.1} parent=1 // pred_region
      _
    $region13: #{deep_mle_classify.1} parent=1 // pred_fallthru
      _
    // Predicated region
    $region14: #{deep_mle_classify.1} parent=1 // pred_check
      _
    $region15: #{deep_mle_classify.1} parent=1 // pred_check_branch
      %30 = sbr.rel (0) target = $region17
    $region16: #{deep_mle_classify.1} parent=1 // pred_region
      _
    $region17: #{deep_mle_classify.1} parent=1 // pred_fallthru
      _
    // Predicated region
    $region18: #{deep_mle_classify.1} parent=1 // pred_check
      _
    $region19: #{deep_mle_classify.1} parent=1 // pred_check_branch
      %32 = sbr.rel (0) target = $region21
    $region20: #{deep_mle_classify.1} parent=1 // pred_region
      _
    $region21: #{deep_mle_classify.1} parent=1 // pred_fallthru
      _
    // Predicated region
    $region22: #{deep_mle_classify.1} parent=1 // pred_check
      _
    $region23: #{deep_mle_classify.1} parent=1 // pred_check_branch
      %34 = sbr.rel (0) target = $region25
    $region24: #{deep_mle_classify.1} parent=1 // pred_region
      _
    $region25: #{deep_mle_classify.1} parent=1 // pred_fallthru
      _
    // Predicated region
    $region26: #{deep_mle_classify.1} parent=1 // pred_check
      _
    $region27: #{deep_mle_classify.1} parent=1 // pred_check_branch
      %36 = sbr.rel (0) target = $region29
    $region28: #{deep_mle_classify.1} parent=1 // pred_region
      _
    $region29: #{deep_mle_classify.1} parent=1 // pred_fallthru
      _
    // Predicated region
    $region30: #{deep_mle_classify.1} parent=1 // pred_check
      _
    $region31: #{deep_mle_classify.1} parent=1 // pred_check_branch
      %38 = sbr.rel (0) target = $region33
    $region32: #{deep_mle_classify.1} parent=1 // pred_region
      %39 = dma.done [#allocation3], 8192
    $region33: #{deep_mle_classify.1} parent=1 // pred_fallthru
      _
    %v41 = vld [vmem:[%s2] sm:$0x1]
    %v42 = vld [vmem:[%s0] sm:$0xff]
    %v43 = vld [vmem:[%s0 + $0x8] sm:$0xff]
    %v44 = vld [vmem:[%s0 + $0x10] sm:$0xff]
    %v45 = vld [vmem:[%s0 + $0x18] sm:$0xff]
    %v46 = vld [vmem:[%s0 + $0x20] sm:$0xff]
    %v47 = vld [vmem:[%s0 + $0x28] sm:$0xff]
    %v48 = vld [vmem:[%s0 + $0x30] sm:$0xff]
    %v49 = vld [vmem:[%s0 + $0x38] sm:$0xff]
    %v50 = vld [vmem:[#allocation2] sm:$0xf]
    %v51 = vld [vmem:[#allocation2 + $0x4] sm:$0xf]
    %v52 = vld [vmem:[#allocation2 + $0x8] sm:$0xf]
    %v53 = vld [vmem:[#allocation2 + $0xc] sm:$0xf]
    %v54 = vld [vmem:[#allocation2 + $0x10] sm:$0xf]
    %v55 = vld [vmem:[#allocation2 + $0x14] sm:$0xf]
    %v56 = vld [vmem:[#allocation2 + $0x18] sm:$0xf]
    %v57 = vld [vmem:[#allocation2 + $0x1c] sm:$0xf]
    %v58 = vld [vmem:[#allocation2 + $0x20] sm:$0xf]
    %v59 = vld [vmem:[#allocation2 + $0x24] sm:$0xf]
    %v60 = vld [vmem:[#allocation2 + $0x28] sm:$0xf]
    %v61 = vld [vmem:[#allocation2 + $0x2c] sm:$0xf]
    %v62 = vld [vmem:[#allocation2 + $0x30] sm:$0xf]
    %v63 = vld [vmem:[#allocation2 + $0x34] sm:$0xf]
    %v64 = vld [vmem:[#allocation2 + $0x38] sm:$0xf]
    %v65 = vld [vmem:[#allocation2 + $0x3c] sm:$0xf]
    %v66 = vld [vmem:[#allocation2 + $0x40] sm:$0xf]
    %v67 = vld [vmem:[#allocation2 + $0x44] sm:$0xf]
    %v68 = vld [vmem:[#allocation2 + $0x48] sm:$0xf]
    %v69 = vld [vmem:[#allocation2 + $0x4c] sm:$0xf]
    %v70 = vld [vmem:[#allocation2 + $0x50] sm:$0xf]
    %v71 = vld [vmem:[#allocation2 + $0x54] sm:$0xf]
    %v72 = vld [vmem:[#allocation2 + $0x58] sm:$0xf]
    %v73 = vld [vmem:[#allocation2 + $0x5c] sm:$0xf]
    %v74 = vld [vmem:[#allocation2 + $0x60] sm:$0xf]
    %v75 = vld [vmem:[#allocation2 + $0x64] sm:$0xf]
    %v76 = vld [vmem:[#allocation2 + $0x68] sm:$0xf]
    %v77 = vld [vmem:[#allocation2 + $0x6c] sm:$0xf]
    %v78 = vld [vmem:[#allocation2 + $0x70] sm:$0xf]
    %v79 = vld [vmem:[#allocation2 + $0x74] sm:$0xf]
    %v80 = vld [vmem:[#allocation2 + $0x78] sm:$0xf]
    %v81 = vld [vmem:[#allocation2 + $0x7c] sm:$0xf]
    %v82 = vld [vmem:[#allocation2 + $0x80] sm:$0xf]
    %v83 = vld [vmem:[#allocation2 + $0x84] sm:$0xf]
    %v84 = vld [vmem:[#allocation2 + $0x88] sm:$0xf]
    %v85 = vld [vmem:[#allocation2 + $0x8c] sm:$0xf]
    %v86 = vld [vmem:[#allocation2 + $0x90] sm:$0xf]
    %v87 = vld [vmem:[#allocation2 + $0x94] sm:$0xf]
    %v88 = vld [vmem:[#allocation2 + $0x98] sm:$0xf]
    %v89 = vld [vmem:[#allocation2 + $0x9c] sm:$0xf]
    %v90 = vld [vmem:[#allocation2 + $0xa0] sm:$0xf]
    %v91 = vld [vmem:[#allocation2 + $0xa4] sm:$0xf]
    %v92 = vld [vmem:[#allocation2 + $0xa8] sm:$0xf]
    %v93 = vld [vmem:[#allocation2 + $0xac] sm:$0xf]
    %v94 = vld [vmem:[#allocation2 + $0xb0] sm:$0xf]
    %v95 = vld [vmem:[#allocation2 + $0xb4] sm:$0xf]
    %v96 = vld [vmem:[#allocation2 + $0xb8] sm:$0xf]
    %v97 = vld [vmem:[#allocation2 + $0xbc] sm:$0xf]
    %v98 = vld [vmem:[#allocation2 + $0xc0] sm:$0xf]
    %v99 = vld [vmem:[#allocation2 + $0xc4] sm:$0xf]
    %v100 = vld [vmem:[#allocation2 + $0xc8] sm:$0xf]
    %v101 = vld [vmem:[#allocation2 + $0xcc] sm:$0xf]
    %v102 = vld [vmem:[#allocation2 + $0xd0] sm:$0xf]
    %v103 = vld [vmem:[#allocation2 + $0xd4] sm:$0xf]
    %v104 = vld [vmem:[#allocation2 + $0xd8] sm:$0xf]
    %v105 = vld [vmem:[#allocation2 + $0xdc] sm:$0xf]
    %v106 = vld [vmem:[#allocation2 + $0xe0] sm:$0xf]
    %v107 = vld [vmem:[#allocation2 + $0xe4] sm:$0xf]
    %v108 = vld [vmem:[#allocation2 + $0xe8] sm:$0xf]
    %v109 = vld [vmem:[#allocation2 + $0xec] sm:$0xf]
    %v110 = vld [vmem:[#allocation2 + $0xf0] sm:$0xf]
    %v111 = vld [vmem:[#allocation2 + $0xf4] sm:$0xf]
    %v112 = vld [vmem:[#allocation2 + $0xf8] sm:$0xf]
    %v113 = vld [vmem:[#allocation2 + $0xfc] sm:$0xf]
    %v114 = vld [vmem:[#allocation2 + $0x100] sm:$0xf]
    %v115 = vld [vmem:[#allocation2 + $0x104] sm:$0xf]
    %v116 = vld [vmem:[#allocation2 + $0x108] sm:$0xf]
    %v117 = vld [vmem:[#allocation2 + $0x10c] sm:$0xf]
    %v118 = vld [vmem:[#allocation2 + $0x110] sm:$0xf]
    %v119 = vld [vmem:[#allocation2 + $0x114] sm:$0xf]
    %v120 = vld [vmem:[#allocation2 + $0x118] sm:$0xf]
    %v121 = vld [vmem:[#allocation2 + $0x11c] sm:$0xf]
    %v122 = vld [vmem:[#allocation2 + $0x120] sm:$0xf]
    %v123 = vld [vmem:[#allocation2 + $0x124] sm:$0xf]
    %v124 = vld [vmem:[#allocation2 + $0x128] sm:$0xf]
    %v125 = vld [vmem:[#allocation2 + $0x12c] sm:$0xf]
    %v126 = vld [vmem:[#allocation2 + $0x130] sm:$0xf]
    %v127 = vld [vmem:[#allocation2 + $0x134] sm:$0xf]
    %v128 = vld [vmem:[#allocation2 + $0x138] sm:$0xf]
    %v129 = vld [vmem:[#allocation2 + $0x13c] sm:$0xf]
    %v130 = vld [vmem:[#allocation2 + $0x140] sm:$0xf]
    %v131 = vld [vmem:[#allocation2 + $0x144] sm:$0xf]
    %v132 = vld [vmem:[#allocation2 + $0x148] sm:$0xf]
    %v133 = vld [vmem:[#allocation2 + $0x14c] sm:$0xf]
    %v134 = vld [vmem:[#allocation2 + $0x150] sm:$0xf]
    %v135 = vld [vmem:[#allocation2 + $0x154] sm:$0xf]
    %v136 = vld [vmem:[#allocation2 + $0x158] sm:$0xf]
    %v137 = vld [vmem:[#allocation2 + $0x15c] sm:$0xf]
    %v138 = vld [vmem:[#allocation2 + $0x160] sm:$0xf]
    %v139 = vld [vmem:[#allocation2 + $0x164] sm:$0xf]
    %v140 = vld [vmem:[#allocation2 + $0x168] sm:$0xf]
    %v141 = vld [vmem:[#allocation2 + $0x16c] sm:$0xf]
    %v142 = vld [vmem:[#allocation2 + $0x170] sm:$0xf]
    %v143 = vld [vmem:[#allocation2 + $0x174] sm:$0xf]
    %v144 = vld [vmem:[#allocation2 + $0x178] sm:$0xf]
    %v145 = vld [vmem:[#allocation2 + $0x17c] sm:$0xf]
    %v146 = vld [vmem:[#allocation2 + $0x180] sm:$0xf]
    %v147 = vld [vmem:[#allocation2 + $0x184] sm:$0xf]
    %v148 = vld [vmem:[#allocation2 + $0x188] sm:$0xf]
    %v149 = vld [vmem:[#allocation2 + $0x18c] sm:$0xf]
    %v150 = vld [vmem:[#allocation2 + $0x190] sm:$0xf]
    %v151 = vld [vmem:[#allocation2 + $0x194] sm:$0xf]
    %v152 = vld [vmem:[#allocation2 + $0x198] sm:$0xf]
    %v153 = vld [vmem:[#allocation2 + $0x19c] sm:$0xf]
    %v154 = vld [vmem:[#allocation2 + $0x1a0] sm:$0xf]
    %v155 = vld [vmem:[#allocation2 + $0x1a4] sm:$0xf]
    %v156 = vld [vmem:[#allocation2 + $0x1a8] sm:$0xf]
    %v157 = vld [vmem:[#allocation2 + $0x1ac] sm:$0xf]
    %v158 = vld [vmem:[#allocation2 + $0x1b0] sm:$0xf]
    %v159 = vld [vmem:[#allocation2 + $0x1b4] sm:$0xf]
    %v160 = vld [vmem:[#allocation2 + $0x1b8] sm:$0xf]
    %v161 = vld [vmem:[#allocation2 + $0x1bc] sm:$0xf]
    %v162 = vld [vmem:[#allocation2 + $0x1c0] sm:$0xf]
    %v163 = vld [vmem:[#allocation2 + $0x1c4] sm:$0xf]
    %v164 = vld [vmem:[#allocation2 + $0x1c8] sm:$0xf]
    %v165 = vld [vmem:[#allocation2 + $0x1cc] sm:$0xf]
    %v166 = vld [vmem:[#allocation2 + $0x1d0] sm:$0xf]
    %v167 = vld [vmem:[#allocation2 + $0x1d4] sm:$0xf]
    %v168 = vld [vmem:[#allocation2 + $0x1d8] sm:$0xf]
    %v169 = vld [vmem:[#allocation2 + $0x1dc] sm:$0xf]
    %v170 = vld [vmem:[#allocation2 + $0x1e0] sm:$0xf]
    %v171 = vld [vmem:[#allocation2 + $0x1e4] sm:$0xf]
    %v172 = vld [vmem:[#allocation2 + $0x1e8] sm:$0xf]
    %v173 = vld [vmem:[#allocation2 + $0x1ec] sm:$0xf]
    %v174 = vld [vmem:[#allocation2 + $0x1f0] sm:$0xf]
    %v175 = vld [vmem:[#allocation2 + $0x1f4] sm:$0xf]
    %v176 = vld [vmem:[#allocation2 + $0x1f8] sm:$0xf]
    %v177 = vld [vmem:[#allocation2 + $0x1fc] sm:$0xf]
    %v186 = vunpack.c.l.b16 %v42
    %v187 = vunpack.c.h.b16 %v42
    %v188 = vunpack.c.l.b16 %v43
    %v189 = vunpack.c.h.b16 %v43
    %v190 = vunpack.c.l.b16 %v44
    %v191 = vunpack.c.h.b16 %v44
    %v192 = vunpack.c.l.b16 %v45
    %v193 = vunpack.c.h.b16 %v45
    %v194 = vunpack.c.l.b16 %v46
    %v195 = vunpack.c.h.b16 %v46
    %v196 = vunpack.c.l.b16 %v47
    %v197 = vunpack.c.h.b16 %v47
    %v198 = vunpack.c.l.b16 %v48
    %v199 = vunpack.c.h.b16 %v48
    %v200 = vunpack.c.l.b16 %v49
    %v201 = vunpack.c.h.b16 %v49
    %v202 = vpack.c.b16 %v194, %v186
    %v203 = vpack.c.b16 %v195, %v187
    %v204 = vpack.c.b16 %v196, %v188
    %v205 = vpack.c.b16 %v197, %v189
    %v206 = vpack.c.b16 %v198, %v190
    %v207 = vpack.c.b16 %v199, %v191
    %v208 = vpack.c.b16 %v200, %v192
    %v209 = vpack.c.b16 %v201, %v193
    %v346 = vunpack.c.l.b16 %v50
    %v347 = vunpack.c.l.b16 %v51
    %v348 = vunpack.c.l.b16 %v52
    %v349 = vunpack.c.l.b16 %v53
    %v350 = vunpack.c.l.b16 %v54
    %v351 = vunpack.c.l.b16 %v55
    %v352 = vunpack.c.l.b16 %v56
    %v353 = vunpack.c.l.b16 %v57
    %v354 = vunpack.c.l.b16 %v58
    %v355 = vunpack.c.l.b16 %v59
    %v356 = vunpack.c.l.b16 %v60
    %v357 = vunpack.c.l.b16 %v61
    %v358 = vunpack.c.l.b16 %v62
    %v359 = vunpack.c.l.b16 %v63
    %v360 = vunpack.c.l.b16 %v64
    %v361 = vunpack.c.l.b16 %v65
    %v362 = vunpack.c.l.b16 %v66
    %v363 = vunpack.c.l.b16 %v67
    %v364 = vunpack.c.l.b16 %v68
    %v365 = vunpack.c.l.b16 %v69
    %v366 = vunpack.c.l.b16 %v70
    %v367 = vunpack.c.l.b16 %v71
    %v368 = vunpack.c.l.b16 %v72
    %v369 = vunpack.c.l.b16 %v73
    %v370 = vunpack.c.l.b16 %v74
    %v371 = vunpack.c.l.b16 %v75
    %v372 = vunpack.c.l.b16 %v76
    %v373 = vunpack.c.l.b16 %v77
    %v374 = vunpack.c.l.b16 %v78
    %v375 = vunpack.c.l.b16 %v79
    %v376 = vunpack.c.l.b16 %v80
    %v377 = vunpack.c.l.b16 %v81
    %v378 = vunpack.c.l.b16 %v82
    %v379 = vunpack.c.l.b16 %v83
    %v380 = vunpack.c.l.b16 %v84
    %v381 = vunpack.c.l.b16 %v85
    %v382 = vunpack.c.l.b16 %v86
    %v383 = vunpack.c.l.b16 %v87
    %v384 = vunpack.c.l.b16 %v88
    %v385 = vunpack.c.l.b16 %v89
    %v386 = vunpack.c.l.b16 %v90
    %v387 = vunpack.c.l.b16 %v91
    %v388 = vunpack.c.l.b16 %v92
    %v389 = vunpack.c.l.b16 %v93
    %v390 = vunpack.c.l.b16 %v94
    %v391 = vunpack.c.l.b16 %v95
    %v392 = vunpack.c.l.b16 %v96
    %v393 = vunpack.c.l.b16 %v97
    %v394 = vunpack.c.l.b16 %v98
    %v395 = vunpack.c.l.b16 %v99
    %v396 = vunpack.c.l.b16 %v100
    %v397 = vunpack.c.l.b16 %v101
    %v398 = vunpack.c.l.b16 %v102
    %v399 = vunpack.c.l.b16 %v103
    %v400 = vunpack.c.l.b16 %v104
    %v401 = vunpack.c.l.b16 %v105
    %v402 = vunpack.c.l.b16 %v106
    %v403 = vunpack.c.l.b16 %v107
    %v404 = vunpack.c.l.b16 %v108
    %v405 = vunpack.c.l.b16 %v109
    %v406 = vunpack.c.l.b16 %v110
    %v407 = vunpack.c.l.b16 %v111
    %v408 = vunpack.c.l.b16 %v112
    %v409 = vunpack.c.l.b16 %v113
    %v410 = vunpack.c.l.b16 %v114
    %v411 = vunpack.c.l.b16 %v115
    %v412 = vunpack.c.l.b16 %v116
    %v413 = vunpack.c.l.b16 %v117
    %v414 = vunpack.c.l.b16 %v118
    %v415 = vunpack.c.l.b16 %v119
    %v416 = vunpack.c.l.b16 %v120
    %v417 = vunpack.c.l.b16 %v121
    %v418 = vunpack.c.l.b16 %v122
    %v419 = vunpack.c.l.b16 %v123
    %v420 = vunpack.c.l.b16 %v124
    %v421 = vunpack.c.l.b16 %v125
    %v422 = vunpack.c.l.b16 %v126
    %v423 = vunpack.c.l.b16 %v127
    %v424 = vunpack.c.l.b16 %v128
    %v425 = vunpack.c.l.b16 %v129
    %v426 = vunpack.c.l.b16 %v130
    %v427 = vunpack.c.l.b16 %v131
    %v428 = vunpack.c.l.b16 %v132
    %v429 = vunpack.c.l.b16 %v133
    %v430 = vunpack.c.l.b16 %v134
    %v431 = vunpack.c.l.b16 %v135
    %v432 = vunpack.c.l.b16 %v136
    %v433 = vunpack.c.l.b16 %v137
    %v434 = vunpack.c.l.b16 %v138
    %v435 = vunpack.c.l.b16 %v139
    %v436 = vunpack.c.l.b16 %v140
    %v437 = vunpack.c.l.b16 %v141
    %v438 = vunpack.c.l.b16 %v142
    %v439 = vunpack.c.l.b16 %v143
    %v440 = vunpack.c.l.b16 %v144
    %v441 = vunpack.c.l.b16 %v145
    %v442 = vunpack.c.l.b16 %v146
    %v443 = vunpack.c.l.b16 %v147
    %v444 = vunpack.c.l.b16 %v148
    %v445 = vunpack.c.l.b16 %v149
    %v446 = vunpack.c.l.b16 %v150
    %v447 = vunpack.c.l.b16 %v151
    %v448 = vunpack.c.l.b16 %v152
    %v449 = vunpack.c.l.b16 %v153
    %v450 = vunpack.c.l.b16 %v154
    %v451 = vunpack.c.l.b16 %v155
    %v452 = vunpack.c.l.b16 %v156
    %v453 = vunpack.c.l.b16 %v157
    %v454 = vunpack.c.l.b16 %v158
    %v455 = vunpack.c.l.b16 %v159
    %v456 = vunpack.c.l.b16 %v160
    %v457 = vunpack.c.l.b16 %v161
    %v458 = vunpack.c.l.b16 %v162
    %v459 = vunpack.c.l.b16 %v163
    %v460 = vunpack.c.l.b16 %v164
    %v461 = vunpack.c.l.b16 %v165
    %v462 = vunpack.c.l.b16 %v166
    %v463 = vunpack.c.l.b16 %v167
    %v464 = vunpack.c.l.b16 %v168
    %v465 = vunpack.c.l.b16 %v169
    %v466 = vunpack.c.l.b16 %v170
    %v467 = vunpack.c.l.b16 %v171
    %v468 = vunpack.c.l.b16 %v172
    %v469 = vunpack.c.l.b16 %v173
    %v470 = vunpack.c.l.b16 %v174
    %v471 = vunpack.c.l.b16 %v175
    %v472 = vunpack.c.l.b16 %v176
    %v473 = vunpack.c.l.b16 %v177
    %v474 = vpack.c.b16 %v347, %v346
    %v475 = vpack.c.b16 %v349, %v348
    %v476 = vpack.c.b16 %v351, %v350
    %v477 = vpack.c.b16 %v353, %v352
    %v478 = vpack.c.b16 %v355, %v354
    %v479 = vpack.c.b16 %v357, %v356
    %v480 = vpack.c.b16 %v359, %v358
    %v481 = vpack.c.b16 %v361, %v360
    %v482 = vpack.c.b16 %v363, %v362
    %v483 = vpack.c.b16 %v365, %v364
    %v484 = vpack.c.b16 %v367, %v366
    %v485 = vpack.c.b16 %v369, %v368
    %v486 = vpack.c.b16 %v371, %v370
    %v487 = vpack.c.b16 %v373, %v372
    %v488 = vpack.c.b16 %v375, %v374
    %v489 = vpack.c.b16 %v377, %v376
    %v490 = vpack.c.b16 %v379, %v378
    %v491 = vpack.c.b16 %v381, %v380
    %v492 = vpack.c.b16 %v383, %v382
    %v493 = vpack.c.b16 %v385, %v384
    %v494 = vpack.c.b16 %v387, %v386
    %v495 = vpack.c.b16 %v389, %v388
    %v496 = vpack.c.b16 %v391, %v390
    %v497 = vpack.c.b16 %v393, %v392
    %v498 = vpack.c.b16 %v395, %v394
    %v499 = vpack.c.b16 %v397, %v396
    %v500 = vpack.c.b16 %v399, %v398
    %v501 = vpack.c.b16 %v401, %v400
    %v502 = vpack.c.b16 %v403, %v402
    %v503 = vpack.c.b16 %v405, %v404
    %v504 = vpack.c.b16 %v407, %v406
    %v505 = vpack.c.b16 %v409, %v408
    %v506 = vpack.c.b16 %v411, %v410
    %v507 = vpack.c.b16 %v413, %v412
    %v508 = vpack.c.b16 %v415, %v414
    %v509 = vpack.c.b16 %v417, %v416
    %v510 = vpack.c.b16 %v419, %v418
    %v511 = vpack.c.b16 %v421, %v420
    %v512 = vpack.c.b16 %v423, %v422
    %v513 = vpack.c.b16 %v425, %v424
    %v514 = vpack.c.b16 %v427, %v426
    %v515 = vpack.c.b16 %v429, %v428
    %v516 = vpack.c.b16 %v431, %v430
    %v517 = vpack.c.b16 %v433, %v432
    %v518 = vpack.c.b16 %v435, %v434
    %v519 = vpack.c.b16 %v437, %v436
    %v520 = vpack.c.b16 %v439, %v438
    %v521 = vpack.c.b16 %v441, %v440
    %v522 = vpack.c.b16 %v443, %v442
    %v523 = vpack.c.b16 %v445, %v444
    %v524 = vpack.c.b16 %v447, %v446
    %v525 = vpack.c.b16 %v449, %v448
    %v526 = vpack.c.b16 %v451, %v450
    %v527 = vpack.c.b16 %v453, %v452
    %v528 = vpack.c.b16 %v455, %v454
    %v529 = vpack.c.b16 %v457, %v456
    %v530 = vpack.c.b16 %v459, %v458
    %v531 = vpack.c.b16 %v461, %v460
    %v532 = vpack.c.b16 %v463, %v462
    %v533 = vpack.c.b16 %v465, %v464
    %v534 = vpack.c.b16 %v467, %v466
    %v535 = vpack.c.b16 %v469, %v468
    %v536 = vpack.c.b16 %v471, %v470
    %v537 = vpack.c.b16 %v473, %v472
    %602 = vmatprep.subr.bf16.mxu0 0
    %603 = vmatpush1.bf16.msra.mxu0 %v474
    %604 = vmatprep.subr.bf16.mxu0 0
    %605 = vmatpush1.bf16.msra.mxu0 %v475
    %606 = vmatprep.subr.bf16.mxu0 0
    %607 = vmatpush1.bf16.msra.mxu0 %v476
    %608 = vmatprep.subr.bf16.mxu0 0
    %609 = vmatpush1.bf16.msra.mxu0 %v477
    %610 = vmatprep.subr.bf16.mxu0 0
    %611 = vmatpush1.bf16.msra.mxu0 %v478
    %612 = vmatprep.subr.bf16.mxu0 0
    %613 = vmatpush1.bf16.msra.mxu0 %v479
    %614 = vmatprep.subr.bf16.mxu0 0
    %615 = vmatpush1.bf16.msra.mxu0 %v480
    %616 = vmatprep.subr.bf16.mxu0 0
    %617 = vmatpush1.bf16.msra.mxu0 %v481
    %618 = vmatprep.subr.bf16.mxu0 0
    %619 = vmatpush1.bf16.msra.mxu0 %v482
    %620 = vmatprep.subr.bf16.mxu0 0
    %621 = vmatpush1.bf16.msra.mxu0 %v483
    %622 = vmatprep.subr.bf16.mxu0 0
    %623 = vmatpush1.bf16.msra.mxu0 %v484
    %624 = vmatprep.subr.bf16.mxu0 0
    %625 = vmatpush1.bf16.msra.mxu0 %v485
    %626 = vmatprep.subr.bf16.mxu0 0
    %627 = vmatpush1.bf16.msra.mxu0 %v486
    %628 = vmatprep.subr.bf16.mxu0 0
    %629 = vmatpush1.bf16.msra.mxu0 %v487
    %630 = vmatprep.subr.bf16.mxu0 0
    %631 = vmatpush1.bf16.msra.mxu0 %v488
    %632 = vmatprep.subr.bf16.mxu0 0
    %633 = vmatpush1.bf16.msra.mxu0 %v489
    %634 = vmatprep.mubr.bf16.mxu0 %v203
    %635 = vmatmul.mubr.bf16.gmra.mrb[0].mxu0 %v202
    %v636 = vpop.f32.mrb[0].mxu0
    %v637 = vadd.f32 0.0, %v636
    %v638 = vpop.f32.mrb[0].mxu0
    %v639 = vpop.f32.mrb[0].mxu0
    %v640 = vadd.f32 0.0, %v639
    %v641 = vpop.f32.mrb[0].mxu0
    %642 = vdwg.mxu0
    %643 = vmatprep.subr.bf16.mxu0 0
    %644 = vmatpush1.bf16.msra.mxu0 %v490
    %645 = vmatprep.subr.bf16.mxu0 0
    %646 = vmatpush1.bf16.msra.mxu0 %v491
    %647 = vmatprep.subr.bf16.mxu0 0
    %648 = vmatpush1.bf16.msra.mxu0 %v492
    %649 = vmatprep.subr.bf16.mxu0 0
    %650 = vmatpush1.bf16.msra.mxu0 %v493
    %651 = vmatprep.subr.bf16.mxu0 0
    %652 = vmatpush1.bf16.msra.mxu0 %v494
    %653 = vmatprep.subr.bf16.mxu0 0
    %654 = vmatpush1.bf16.msra.mxu0 %v495
    %655 = vmatprep.subr.bf16.mxu0 0
    %656 = vmatpush1.bf16.msra.mxu0 %v496
    %657 = vmatprep.subr.bf16.mxu0 0
    %658 = vmatpush1.bf16.msra.mxu0 %v497
    %659 = vmatprep.subr.bf16.mxu0 0
    %660 = vmatpush1.bf16.msra.mxu0 %v498
    %661 = vmatprep.subr.bf16.mxu0 0
    %662 = vmatpush1.bf16.msra.mxu0 %v499
    %663 = vmatprep.subr.bf16.mxu0 0
    %664 = vmatpush1.bf16.msra.mxu0 %v500
    %665 = vmatprep.subr.bf16.mxu0 0
    %666 = vmatpush1.bf16.msra.mxu0 %v501
    %667 = vmatprep.subr.bf16.mxu0 0
    %668 = vmatpush1.bf16.msra.mxu0 %v502
    %669 = vmatprep.subr.bf16.mxu0 0
    %670 = vmatpush1.bf16.msra.mxu0 %v503
    %671 = vmatprep.subr.bf16.mxu0 0
    %672 = vmatpush1.bf16.msra.mxu0 %v504
    %673 = vmatprep.subr.bf16.mxu0 0
    %674 = vmatpush1.bf16.msra.mxu0 %v505
    %675 = vmatprep.mubr.bf16.mxu0 %v205
    %676 = vmatmul.mubr.bf16.gmra.mrb[0].mxu0 %v204
    %v677 = vpop.f32.mrb[0].mxu0
    %v678 = vadd.f32 %v637, %v677
    %v679 = vpop.f32.mrb[0].mxu0
    %v680 = vpop.f32.mrb[0].mxu0
    %v681 = vadd.f32 %v640, %v680
    %v682 = vpop.f32.mrb[0].mxu0
    %683 = vdwg.mxu0
    %684 = vmatprep.subr.bf16.mxu0 0
    %685 = vmatpush1.bf16.msra.mxu0 %v506
    %686 = vmatprep.subr.bf16.mxu0 0
    %687 = vmatpush1.bf16.msra.mxu0 %v507
    %688 = vmatprep.subr.bf16.mxu0 0
    %689 = vmatpush1.bf16.msra.mxu0 %v508
    %690 = vmatprep.subr.bf16.mxu0 0
    %691 = vmatpush1.bf16.msra.mxu0 %v509
    %692 = vmatprep.subr.bf16.mxu0 0
    %693 = vmatpush1.bf16.msra.mxu0 %v510
    %694 = vmatprep.subr.bf16.mxu0 0
    %695 = vmatpush1.bf16.msra.mxu0 %v511
    %696 = vmatprep.subr.bf16.mxu0 0
    %697 = vmatpush1.bf16.msra.mxu0 %v512
    %698 = vmatprep.subr.bf16.mxu0 0
    %699 = vmatpush1.bf16.msra.mxu0 %v513
    %700 = vmatprep.subr.bf16.mxu0 0
    %701 = vmatpush1.bf16.msra.mxu0 %v514
    %702 = vmatprep.subr.bf16.mxu0 0
    %703 = vmatpush1.bf16.msra.mxu0 %v515
    %704 = vmatprep.subr.bf16.mxu0 0
    %705 = vmatpush1.bf16.msra.mxu0 %v516
    %706 = vmatprep.subr.bf16.mxu0 0
    %707 = vmatpush1.bf16.msra.mxu0 %v517
    %708 = vmatprep.subr.bf16.mxu0 0
    %709 = vmatpush1.bf16.msra.mxu0 %v518
    %710 = vmatprep.subr.bf16.mxu0 0
    %711 = vmatpush1.bf16.msra.mxu0 %v519
    %712 = vmatprep.subr.bf16.mxu0 0
    %713 = vmatpush1.bf16.msra.mxu0 %v520
    %714 = vmatprep.subr.bf16.mxu0 0
    %715 = vmatpush1.bf16.msra.mxu0 %v521
    %716 = vmatprep.mubr.bf16.mxu0 %v207
    %717 = vmatmul.mubr.bf16.gmra.mrb[0].mxu0 %v206
    %v718 = vpop.f32.mrb[0].mxu0
    %v719 = vadd.f32 %v678, %v718
    %v720 = vpop.f32.mrb[0].mxu0
    %v721 = vpop.f32.mrb[0].mxu0
    %v722 = vadd.f32 %v681, %v721
    %v723 = vpop.f32.mrb[0].mxu0
    %724 = vdwg.mxu0
    %725 = vmatprep.subr.bf16.mxu0 0
    %726 = vmatpush1.bf16.msra.mxu0 %v522
    %727 = vmatprep.subr.bf16.mxu0 0
    %728 = vmatpush1.bf16.msra.mxu0 %v523
    %729 = vmatprep.subr.bf16.mxu0 0
    %730 = vmatpush1.bf16.msra.mxu0 %v524
    %731 = vmatprep.subr.bf16.mxu0 0
    %732 = vmatpush1.bf16.msra.mxu0 %v525
    %733 = vmatprep.subr.bf16.mxu0 0
    %734 = vmatpush1.bf16.msra.mxu0 %v526
    %735 = vmatprep.subr.bf16.mxu0 0
    %736 = vmatpush1.bf16.msra.mxu0 %v527
    %737 = vmatprep.subr.bf16.mxu0 0
    %738 = vmatpush1.bf16.msra.mxu0 %v528
    %739 = vmatprep.subr.bf16.mxu0 0
    %740 = vmatpush1.bf16.msra.mxu0 %v529
    %741 = vmatprep.subr.bf16.mxu0 0
    %742 = vmatpush1.bf16.msra.mxu0 %v530
    %743 = vmatprep.subr.bf16.mxu0 0
    %744 = vmatpush1.bf16.msra.mxu0 %v531
    %745 = vmatprep.subr.bf16.mxu0 0
    %746 = vmatpush1.bf16.msra.mxu0 %v532
    %747 = vmatprep.subr.bf16.mxu0 0
    %748 = vmatpush1.bf16.msra.mxu0 %v533
    %749 = vmatprep.subr.bf16.mxu0 0
    %750 = vmatpush1.bf16.msra.mxu0 %v534
    %751 = vmatprep.subr.bf16.mxu0 0
    %752 = vmatpush1.bf16.msra.mxu0 %v535
    %753 = vmatprep.subr.bf16.mxu0 0
    %754 = vmatpush1.bf16.msra.mxu0 %v536
    %755 = vmatprep.subr.bf16.mxu0 0
    %756 = vmatpush1.bf16.msra.mxu0 %v537
    %757 = vmatprep.mubr.bf16.mxu0 %v209
    %758 = vmatmul.mubr.bf16.gmra.mrb[0].mxu0 %v208
    %v759 = vpop.f32.mrb[0].mxu0
    %v760 = vadd.f32 %v719, %v759
    %v761 = vpop.f32.mrb[0].mxu0
    %v762 = vpop.f32.mrb[0].mxu0
    %v763 = vadd.f32 %v722, %v762
    %v764 = vpop.f32.mrb[0].mxu0
    %765 = vdwg.mxu0
    %v767 = vlaneseq
    %v768 = vshrl.u32 %v767, 7
    %v769 = vsub.s32 0, %v768
    %v770 = vrot.slane %v41, %v769
    %v772 = vadd.f32 %v770, %v760
    %v773 = vadd.f32 %v770, %v763
    %v774 = vmax.f32 %v772, 0.0
    %v775 = vmax.f32 %v773, 0.0
    %v776 = vld [vmem:[%s4] sm:$0x1]
    %v777 = vpack.c.bf16 %v775, %v774
    %v778 = vld [vmem:[%s3] sm:$0xf]
    %v779 = vld [vmem:[%s3 + $0x4] sm:$0xf]
    %v780 = vld [vmem:[%s3 + $0x8] sm:$0xf]
    %v781 = vld [vmem:[%s3 + $0xc] sm:$0xf]
    %v782 = vld [vmem:[%s3 + $0x10] sm:$0xf]
    %v783 = vld [vmem:[%s3 + $0x14] sm:$0xf]
    %v784 = vld [vmem:[%s3 + $0x18] sm:$0xf]
    %v785 = vld [vmem:[%s3 + $0x1c] sm:$0xf]
    %v786 = vld [vmem:[%s3 + $0x20] sm:$0xf]
    %v787 = vld [vmem:[%s3 + $0x24] sm:$0xf]
    %v788 = vld [vmem:[%s3 + $0x28] sm:$0xf]
    %v789 = vld [vmem:[%s3 + $0x2c] sm:$0xf]
    %v790 = vld [vmem:[%s3 + $0x30] sm:$0xf]
    %v791 = vld [vmem:[%s3 + $0x34] sm:$0xf]
    %v792 = vld [vmem:[%s3 + $0x38] sm:$0xf]
    %v793 = vld [vmem:[%s3 + $0x3c] sm:$0xf]
    %v810 = vunpack.c.l.b16 %v778
    %v811 = vunpack.c.l.b16 %v779
    %v812 = vunpack.c.l.b16 %v780
    %v813 = vunpack.c.l.b16 %v781
    %v814 = vunpack.c.l.b16 %v782
    %v815 = vunpack.c.l.b16 %v783
    %v816 = vunpack.c.l.b16 %v784
    %v817 = vunpack.c.l.b16 %v785
    %v818 = vunpack.c.l.b16 %v786
    %v819 = vunpack.c.l.b16 %v787
    %v820 = vunpack.c.l.b16 %v788
    %v821 = vunpack.c.l.b16 %v789
    %v822 = vunpack.c.l.b16 %v790
    %v823 = vunpack.c.l.b16 %v791
    %v824 = vunpack.c.l.b16 %v792
    %v825 = vunpack.c.l.b16 %v793
    %v826 = vpack.c.b16 %v811, %v810
    %v827 = vpack.c.b16 %v813, %v812
    %v828 = vpack.c.b16 %v815, %v814
    %v829 = vpack.c.b16 %v817, %v816
    %v830 = vpack.c.b16 %v819, %v818
    %v831 = vpack.c.b16 %v821, %v820
    %v832 = vpack.c.b16 %v823, %v822
    %v833 = vpack.c.b16 %v825, %v824
    %842 = vmatprep.subr.bf16.mxu0 0
    %843 = vmatpush1.bf16.msra.mxu0 %v826
    %844 = vmatprep.subr.bf16.mxu0 0
    %845 = vmatpush1.bf16.msra.mxu0 %v827
    %846 = vmatprep.subr.bf16.mxu0 0
    %847 = vmatpush1.bf16.msra.mxu0 %v828
    %848 = vmatprep.subr.bf16.mxu0 0
    %849 = vmatpush1.bf16.msra.mxu0 %v829
    %850 = vmatprep.subr.bf16.mxu0 0
    %851 = vmatpush1.bf16.msra.mxu0 %v830
    %852 = vmatprep.subr.bf16.mxu0 0
    %853 = vmatpush1.bf16.msra.mxu0 %v831
    %854 = vmatprep.subr.bf16.mxu0 0
    %855 = vmatpush1.bf16.msra.mxu0 %v832
    %856 = vmatprep.subr.bf16.mxu0 0
    %857 = vmatpush1.bf16.msra.mxu0 %v833
    %858 = vmatprep.subr.bf16.mxu0 0
    %859 = vmatpush1.bf16.msra.mxu0 0
    %860 = vmatprep.subr.bf16.mxu0 0
    %861 = vmatpush1.bf16.msra.mxu0 0
    %862 = vmatprep.subr.bf16.mxu0 0
    %863 = vmatpush1.bf16.msra.mxu0 0
    %864 = vmatprep.subr.bf16.mxu0 0
    %865 = vmatpush1.bf16.msra.mxu0 0
    %866 = vmatprep.subr.bf16.mxu0 0
    %867 = vmatpush1.bf16.msra.mxu0 0
    %868 = vmatprep.subr.bf16.mxu0 0
    %869 = vmatpush1.bf16.msra.mxu0 0
    %870 = vmatprep.subr.bf16.mxu0 0
    %871 = vmatpush1.bf16.msra.mxu0 0
    %872 = vmatprep.subr.bf16.mxu0 0
    %873 = vmatpush1.bf16.msra.mxu0 0
    %874 = vmatprep.mubr.bf16.mxu0 0
    %875 = vmatmul.mubr.bf16.gmra.mrb[0].mxu0 %v777
    %v876 = vpop.f32.mrb[0].mxu0
    %v877 = vadd.f32 0.0, %v876
    %v878 = vpop.f32.mrb[0].mxu0
    %v879 = vpop.f32.mrb[0].mxu0
    %v880 = vadd.f32 0.0, %v879
    %v881 = vpop.f32.mrb[0].mxu0
    %882 = vdwg.mxu0
    %v884 = vlaneseq
    %v885 = vshrl.u32 %v884, 7
    %v886 = vsub.s32 0, %v885
    %v887 = vrot.slane %v776, %v886
    %v889 = vadd.f32 %v887, %v877
    %v890 = vadd.f32 %v887, %v880
    %v891 = vmax.f32 %v889, 0.0
    %v892 = vmax.f32 %v890, 0.0
    %s893 = scalar_lea.vmem %s4, 1
    %v894 = vld [vmem:[%s893] sm:$0x1]
    %v895 = vpack.c.bf16 %v892, %v891
    %s896 = scalar_lea.vmem %s3, 64
    %v897 = vld [vmem:[%s896] sm:$0xf]
    %v898 = vld [vmem:[%s896 + $0x4] sm:$0xf]
    %v899 = vld [vmem:[%s896 + $0x8] sm:$0xf]
    %v900 = vld [vmem:[%s896 + $0xc] sm:$0xf]
    %v901 = vld [vmem:[%s896 + $0x10] sm:$0xf]
    %v902 = vld [vmem:[%s896 + $0x14] sm:$0xf]
    %v903 = vld [vmem:[%s896 + $0x18] sm:$0xf]
    %v904 = vld [vmem:[%s896 + $0x1c] sm:$0xf]
    %v905 = vld [vmem:[%s896 + $0x20] sm:$0xf]
    %v906 = vld [vmem:[%s896 + $0x24] sm:$0xf]
    %v907 = vld [vmem:[%s896 + $0x28] sm:$0xf]
    %v908 = vld [vmem:[%s896 + $0x2c] sm:$0xf]
    %v909 = vld [vmem:[%s896 + $0x30] sm:$0xf]
    %v910 = vld [vmem:[%s896 + $0x34] sm:$0xf]
    %v911 = vld [vmem:[%s896 + $0x38] sm:$0xf]
    %v912 = vld [vmem:[%s896 + $0x3c] sm:$0xf]
    %v929 = vunpack.c.l.b16 %v897
    %v930 = vunpack.c.l.b16 %v898
    %v931 = vunpack.c.l.b16 %v899
    %v932 = vunpack.c.l.b16 %v900
    %v933 = vunpack.c.l.b16 %v901
    %v934 = vunpack.c.l.b16 %v902
    %v935 = vunpack.c.l.b16 %v903
    %v936 = vunpack.c.l.b16 %v904
    %v937 = vunpack.c.l.b16 %v905
    %v938 = vunpack.c.l.b16 %v906
    %v939 = vunpack.c.l.b16 %v907
    %v940 = vunpack.c.l.b16 %v908
    %v941 = vunpack.c.l.b16 %v909
    %v942 = vunpack.c.l.b16 %v910
    %v943 = vunpack.c.l.b16 %v911
    %v944 = vunpack.c.l.b16 %v912
    %v945 = vpack.c.b16 %v930, %v929
    %v946 = vpack.c.b16 %v932, %v931
    %v947 = vpack.c.b16 %v934, %v933
    %v948 = vpack.c.b16 %v936, %v935
    %v949 = vpack.c.b16 %v938, %v937
    %v950 = vpack.c.b16 %v940, %v939
    %v951 = vpack.c.b16 %v942, %v941
    %v952 = vpack.c.b16 %v944, %v943
    %961 = vmatprep.subr.bf16.mxu0 0
    %962 = vmatpush1.bf16.msra.mxu0 %v945
    %963 = vmatprep.subr.bf16.mxu0 0
    %964 = vmatpush1.bf16.msra.mxu0 %v946
    %965 = vmatprep.subr.bf16.mxu0 0
    %966 = vmatpush1.bf16.msra.mxu0 %v947
    %967 = vmatprep.subr.bf16.mxu0 0
    %968 = vmatpush1.bf16.msra.mxu0 %v948
    %969 = vmatprep.subr.bf16.mxu0 0
    %970 = vmatpush1.bf16.msra.mxu0 %v949
    %971 = vmatprep.subr.bf16.mxu0 0
    %972 = vmatpush1.bf16.msra.mxu0 %v950
    %973 = vmatprep.subr.bf16.mxu0 0
    %974 = vmatpush1.bf16.msra.mxu0 %v951
    %975 = vmatprep.subr.bf16.mxu0 0
    %976 = vmatpush1.bf16.msra.mxu0 %v952
    %977 = vmatprep.subr.bf16.mxu0 0
    %978 = vmatpush1.bf16.msra.mxu0 0
    %979 = vmatprep.subr.bf16.mxu0 0
    %980 = vmatpush1.bf16.msra.mxu0 0
    %981 = vmatprep.subr.bf16.mxu0 0
    %982 = vmatpush1.bf16.msra.mxu0 0
    %983 = vmatprep.subr.bf16.mxu0 0
    %984 = vmatpush1.bf16.msra.mxu0 0
    %985 = vmatprep.subr.bf16.mxu0 0
    %986 = vmatpush1.bf16.msra.mxu0 0
    %987 = vmatprep.subr.bf16.mxu0 0
    %988 = vmatpush1.bf16.msra.mxu0 0
    %989 = vmatprep.subr.bf16.mxu0 0
    %990 = vmatpush1.bf16.msra.mxu0 0
    %991 = vmatprep.subr.bf16.mxu0 0
    %992 = vmatpush1.bf16.msra.mxu0 0
    %993 = vmatprep.mubr.bf16.mxu0 0
    %994 = vmatmul.mubr.bf16.gmra.mrb[0].mxu0 %v895
    %v995 = vpop.f32.mrb[0].mxu0
    %v996 = vadd.f32 0.0, %v995
    %v997 = vpop.f32.mrb[0].mxu0
    %v998 = vpop.f32.mrb[0].mxu0
    %v999 = vadd.f32 0.0, %v998
    %v1000 = vpop.f32.mrb[0].mxu0
    %1001 = vdwg.mxu0
    %v1003 = vlaneseq
    %v1004 = vshrl.u32 %v1003, 7
    %v1005 = vsub.s32 0, %v1004
    %v1006 = vrot.slane %v894, %v1005
    %v1008 = vadd.f32 %v1006, %v996
    %v1009 = vadd.f32 %v1006, %v999
    %v1010 = vmax.f32 %v1008, 0.0
    %v1011 = vmax.f32 %v1009, 0.0
    %v1012 = vld [vmem:[%s6] sm:$0x1]
    %v1013 = vpack.c.bf16 %v1011, %v1010
    %v1014 = vld [vmem:[%s5] sm:$0xf]
    %v1015 = vld [vmem:[%s5 + $0x4] sm:$0xf]
    %v1016 = vld [vmem:[%s5 + $0x8] sm:$0xf]
    %v1017 = vld [vmem:[%s5 + $0xc] sm:$0xf]
    %v1018 = vld [vmem:[%s5 + $0x10] sm:$0xf]
    %v1019 = vld [vmem:[%s5 + $0x14] sm:$0xf]
    %v1020 = vld [vmem:[%s5 + $0x18] sm:$0xf]
    %v1021 = vld [vmem:[%s5 + $0x1c] sm:$0xf]
    %v1022 = vld [vmem:[%s5 + $0x20] sm:$0xf]
    %v1023 = vld [vmem:[%s5 + $0x24] sm:$0xf]
    %v1024 = vld [vmem:[%s5 + $0x28] sm:$0xf]
    %v1025 = vld [vmem:[%s5 + $0x2c] sm:$0xf]
    %v1026 = vld [vmem:[%s5 + $0x30] sm:$0xf]
    %v1027 = vld [vmem:[%s5 + $0x34] sm:$0xf]
    %v1028 = vld [vmem:[%s5 + $0x38] sm:$0xf]
    %v1029 = vld [vmem:[%s5 + $0x3c] sm:$0xf]
    %v1046 = vunpack.c.l.b16 %v1014
    %v1047 = vunpack.c.l.b16 %v1015
    %v1048 = vunpack.c.l.b16 %v1016
    %v1049 = vunpack.c.l.b16 %v1017
    %v1050 = vunpack.c.l.b16 %v1018
    %v1051 = vunpack.c.l.b16 %v1019
    %v1052 = vunpack.c.l.b16 %v1020
    %v1053 = vunpack.c.l.b16 %v1021
    %v1054 = vunpack.c.l.b16 %v1022
    %v1055 = vunpack.c.l.b16 %v1023
    %v1056 = vunpack.c.l.b16 %v1024
    %v1057 = vunpack.c.l.b16 %v1025
    %v1058 = vunpack.c.l.b16 %v1026
    %v1059 = vunpack.c.l.b16 %v1027
    %v1060 = vunpack.c.l.b16 %v1028
    %v1061 = vunpack.c.l.b16 %v1029
    %v1062 = vpack.c.b16 %v1047, %v1046
    %v1063 = vpack.c.b16 %v1049, %v1048
    %v1064 = vpack.c.b16 %v1051, %v1050
    %v1065 = vpack.c.b16 %v1053, %v1052
    %v1066 = vpack.c.b16 %v1055, %v1054
    %v1067 = vpack.c.b16 %v1057, %v1056
    %v1068 = vpack.c.b16 %v1059, %v1058
    %v1069 = vpack.c.b16 %v1061, %v1060
    %1078 = vmatprep.subr.bf16.mxu0 0
    %1079 = vmatpush1.bf16.msra.mxu0 %v1062
    %1080 = vmatprep.subr.bf16.mxu0 0
    %1081 = vmatpush1.bf16.msra.mxu0 %v1063
    %1082 = vmatprep.subr.bf16.mxu0 0
    %1083 = vmatpush1.bf16.msra.mxu0 %v1064
    %1084 = vmatprep.subr.bf16.mxu0 0
    %1085 = vmatpush1.bf16.msra.mxu0 %v1065
    %1086 = vmatprep.subr.bf16.mxu0 0
    %1087 = vmatpush1.bf16.msra.mxu0 %v1066
    %1088 = vmatprep.subr.bf16.mxu0 0
    %1089 = vmatpush1.bf16.msra.mxu0 %v1067
    %1090 = vmatprep.subr.bf16.mxu0 0
    %1091 = vmatpush1.bf16.msra.mxu0 %v1068
    %1092 = vmatprep.subr.bf16.mxu0 0
    %1093 = vmatpush1.bf16.msra.mxu0 %v1069
    %1094 = vmatprep.subr.bf16.mxu0 0
    %1095 = vmatpush1.bf16.msra.mxu0 0
    %1096 = vmatprep.subr.bf16.mxu0 0
    %1097 = vmatpush1.bf16.msra.mxu0 0
    %1098 = vmatprep.subr.bf16.mxu0 0
    %1099 = vmatpush1.bf16.msra.mxu0 0
    %1100 = vmatprep.subr.bf16.mxu0 0
    %1101 = vmatpush1.bf16.msra.mxu0 0
    %1102 = vmatprep.subr.bf16.mxu0 0
    %1103 = vmatpush1.bf16.msra.mxu0 0
    %1104 = vmatprep.subr.bf16.mxu0 0
    %1105 = vmatpush1.bf16.msra.mxu0 0
    %1106 = vmatprep.subr.bf16.mxu0 0
    %1107 = vmatpush1.bf16.msra.mxu0 0
    %1108 = vmatprep.subr.bf16.mxu0 0
    %1109 = vmatpush1.bf16.msra.mxu0 0
    %1110 = vmatprep.mubr.bf16.mxu0 0
    %1111 = vmatmul.mubr.bf16.gmra.mrb[0].mxu0 %v1013
    %v1112 = vpop.f32.mrb[0].mxu0
    %v1113 = vadd.f32 0.0, %v1112
    %v1114 = vpop.f32.mrb[0].mxu0
    %v1115 = vpop.f32.mrb[0].mxu0
    %v1116 = vadd.f32 0.0, %v1115
    %v1117 = vpop.f32.mrb[0].mxu0
    %1118 = vdwg.mxu0
    %v1120 = vlaneseq
    %v1121 = vshrl.u32 %v1120, 7
    %v1122 = vsub.s32 0, %v1121
    %v1123 = vrot.slane %v1012, %v1122
    %v1125 = vadd.f32 %v1123, %v1113
    %v1126 = vadd.f32 %v1123, %v1116
    %1127 = vmax.xlane.f32.xlu0 %v1125
    %v1128 = vpop.xlane.xlu0 %1127
    %1129 = vmax.xlane.f32.xlu0 %v1126
    %v1130 = vpop.xlane.xlu0 %1129
    %v1131 = vsub.f32 %v1125, %v1128
    %v1132 = vsub.f32 %v1126, %v1130
    %v1133 = vmul.f32 %v1131, 1.442695
    %v1134 = vpow.pop %v1133
    %v1135 = vmul.f32 %v1132, 1.442695
    %v1136 = vpow.pop %v1135
    %1137 = vadd.xlane.f32.xlu0 %v1134
    %v1138 = vpop.xlane.xlu0 %1137
    %1139 = vadd.xlane.f32.xlu0 %v1136
    %v1140 = vpop.xlane.xlu0 %1139
    %v1141 = vlog2.pop %v1138
    %v1142 = vmul.f32 %v1141, 0.6931472
    %v1143 = vlog2.pop %v1140
    %v1144 = vmul.f32 %v1143, 0.6931472
    %v1145 = vsub.f32 %v1131, %v1142
    %v1146 = vsub.f32 %v1132, %v1144
    %1147 = vst [vmem:[%s7] sm:$0xff] %v1145
    %1148 = vst [vmem:[%s7 + $0x8] sm:$0xff] %v1146
    // Predicated region
    $region34: #{deep_mle_classify.1} parent=1 // pred_check
      _
    $region35: #{deep_mle_classify.1} parent=1 // pred_check_branch
      %1150 = sbr.rel (0) target = $region37
    $region36: #{deep_mle_classify.1} parent=1 // pred_region
      _
    $region37: #{deep_mle_classify.1} parent=1 // pred_fallthru
      _
    // Predicated region
    $region38: #{deep_mle_classify.1} parent=1 // pred_check
      _
    $region39: #{deep_mle_classify.1} parent=1 // pred_check_branch
      %1152 = sbr.rel (0) target = $region41
    $region40: #{deep_mle_classify.1} parent=1 // pred_region
      _
    $region41: #{deep_mle_classify.1} parent=1 // pred_fallthru
      _
    %1153 = vsyncpa [#allocation3], 1

</llo_original>
